<compile_context>
chip_gen: v6e
topology: v6e:2x2x1
jax: 0.10.0
libtpu: 0.0.40
codegen_flags: <defaults>
</compile_context>

<pallas_src>
import jax
import jax.numpy as jnp
from jax.experimental import pallas as pl
from jax.experimental.pallas import tpu as pltpu


def init_bias_kernel(bias_ref, out_ref):
    # bias_ref: (1, HW) VMEM tile; out_ref: (TB, HW) VMEM tile.
    scaled = bias_ref[...] * 1000.0                      # one VPU multiply
    out_ref[...] = jnp.broadcast_to(scaled, out_ref.shape)  # broadcast store


def init_bias_forward(x, bias):
    """Reproduces Init_Bias.forward: bias repeated over batch, scaled by 1000.

    x:    (batch, C, H, W)  -- only the batch size is used (as in PyTorch)
    bias: (1, H, W)
    returns: (batch, 1, H, W)
    """
    batch = x.shape[0]
    _, H, W = bias.shape
    HW = H * W

    # Lane-dense flat view of the bias: (1, HW). HW is a multiple of 128 for
    # typical spatial sizes (here 16*16 = 256).
    bias_flat = bias.reshape(1, HW)

    # Coarse batch tiling: a single grid step for small batch; for very large
    # batch, 1024-row f32 tiles (1 MiB at HW=256) keep VMEM use tiny while the
    # 'parallel' axis lets multiple TensorCores shard the write.
    TB = batch if batch <= 1024 else 1024
    grid = (pl.cdiv(batch, TB),)

    out_flat = pl.pallas_call(
        init_bias_kernel,
        out_shape=jax.ShapeDtypeStruct((batch, HW), bias.dtype),
        grid_spec=pltpu.PrefetchScalarGridSpec(
            num_scalar_prefetch=0,
            grid=grid,
            in_specs=[
                # Shared bias tile, same block every step.
                pl.BlockSpec((1, HW), lambda b: (0, 0)),
            ],
            out_specs=pl.BlockSpec((TB, HW), lambda b: (b, 0)),
        ),
        compiler_params=pltpu.CompilerParams(
            dimension_semantics=("parallel",),
        ),
        cost_estimate=pl.CostEstimate(
            flops=HW,                               # one multiply pass
            transcendentals=0,
            bytes_accessed=4 * (HW + batch * HW),   # read bias + write output
        ),
    )(bias_flat)

    # Layout plumbing only (outside the kernel): present NCHW-style result.
    return out_flat.reshape(batch, 1, H, W)


if __name__ == "__main__":
    key = jax.random.PRNGKey(0)
    k_bias, k_x = jax.random.split(key)

    batch, C, H, W = 2, 4, 16, 16

    # Deterministic parameter init (torch.rand + init.uniform_ -> U[0, 1))
    bias = jax.random.uniform(k_bias, (1, H, W), dtype=jnp.float32)

    # Input x; only its batch dim matters for the forward pass.
    x = jax.random.normal(k_x, (batch, C, H, W), dtype=jnp.float32)

    out = init_bias_forward(x, bias)
    out = jax.block_until_ready(out)

    # Reference check (pure JAX): broadcast bias over batch, scale by 1000.
    ref = jnp.broadcast_to(bias[None], (batch, 1, H, W)) * 1000.0
    assert out.shape == (batch, 1, H, W), out.shape
    assert jnp.allclose(out, ref), "mismatch vs reference"

    print("KERNEL_OK")
</pallas_src>

<mosaic_0001>
module attributes {stable_mosaic.version = 11 : i64} {
  func.func @init_bias_kernel(%arg0: i32, %arg1: memref<1x256xf32, #tpu.memory_space<vmem>>, %arg2: memref<2x256xf32, #tpu.memory_space<vmem>>) attributes {dimension_semantics = [#tpu.dimension_semantics<parallel>], iteration_bounds = array<i64: 1>, scalar_prefetch = 0 : i64, scratch_operands = 0 : i64, tpu.core_type = #tpu.core_type<tc>, window_params = [{pipeline_mode = #tpu.pipeline_mode<synchronous>, transform_indices = @transform_0, window_bounds = array<i64: 1, 256>}, {transform_indices = @transform_1, window_bounds = array<i64: 2, 256>}]} {
    %c0 = arith.constant 0 : index
    %c0_0 = arith.constant 0 : index
    %0 = vector.load %arg1[%c0, %c0_0] : memref<1x256xf32, #tpu.memory_space<vmem>>, vector<1x256xf32>
    %cst = arith.constant 1.000000e+03 : f32
    %1 = vector.broadcast %cst : f32 to vector<1x256xf32>
    %2 = arith.mulf %0, %1 : vector<1x256xf32>
    %3 = vector.shape_cast %2 : vector<1x256xf32> to vector<1x256xf32>
    %4 = vector.broadcast %3 : vector<1x256xf32> to vector<2x256xf32>
    %c0_1 = arith.constant 0 : index
    %c0_2 = arith.constant 0 : index
    %5 = vector.load %arg2[%c0_1, %c0_2] : memref<2x256xf32, #tpu.memory_space<vmem>>, vector<2x256xf32>
    tpu.vector_store %arg2[%c0_1, %c0_2], %4 {strides = array<i32>} : memref<2x256xf32, #tpu.memory_space<vmem>>, vector<2x256xf32>,
    return
  }
  func.func @transform_0(%arg0: i32) -> (i32, i32) {
    %c0_i32 = arith.constant 0 : i32
    %c0_i32_0 = arith.constant 0 : i32
    %c0_i32_1 = arith.constant 0 : i32
    return %c0_i32, %c0_i32_0 : i32, i32
  }
  func.func @transform_1(%arg0: i32) -> (i32, i32) {
    %c0_i32 = arith.constant 0 : i32
    %c0_i32_0 = arith.constant 0 : i32
    return %arg0, %c0_i32 : i32, i32
  }
}

</mosaic_0001>

<llo_original>
// kernel: tpu_custom_call.1
$region0: #{tpu_custom_call.1}
  #allocation0 [shape = 'u32[]', space=smem, size = 0x4, offset = 0x4, fixed_abs, tag = 'smem constant byte address 0x4 - core index']
  #allocation1 [shape = 'u32[144,128]{1,0:T(1,128)}', space=vmem, size = 0x12000, scoped, tag = 'internal scratch']
  %s0 = inlined_call_operand.hbm [shape: f32[1,256], index: 0, kind: input, shape index: {}]
  %s1 = inlined_call_operand.hbm [shape: f32[2,256], index: 1, kind: output, shape index: {}]
  %s2 = sld [smem:[#allocation0]]
  $region18: #{tpu_custom_call.1} parent=0
    _
  %s4 = ssub.s32 1, %s2
  %s5 = scalar_select 0, %s4, %s2
  $region1: #{tpu_custom_call.1} parent=0
    #allocation2 [shape = 'u8[1024]{0}', space=vmem, size = 0x400, scoped, tag = 'input window, operand 0, single buffered']
    #allocation3 [shape = 's32[1]{0}', space=sflag, size = 0x4, scoped, tag = 'scoped memory for tpu_custom_call.1']
    #allocation4 [shape = 's32[1]{0}', space=sflag, size = 0x4, scoped, tag = 'scoped memory for tpu_custom_call.1']
    #allocation5 [shape = 'u8[2048]{0}', space=vmem, size = 0x800, scoped, tag = 'output window, operand 0, single buffered']
    %6 = vsyncpa [#allocation3], 0
    %7 = vsyncpa [#allocation4], 0
    // Predicated region
    $region2: #{tpu_custom_call.1} parent=1 // pred_check
      _
    $region3: #{tpu_custom_call.1} parent=1 // pred_check_branch
      %9 = sbr.rel (0) target = $region5
    $region4: #{tpu_custom_call.1} parent=1 // pred_region
      %s11 = ssub.s32 32, 32
      %12 = vsyncadd [#allocation3], %s11
      %s14 = sshll.u32 [#allocation2], 4
      %s15 = int_to_ptr.vmem [resolvable:$true] %s14
      %17 = dma.hbm_to_vmem [thread:$0]  %s0, 32, %s15, [#allocation3]
    $region5: #{tpu_custom_call.1} parent=1 // pred_fallthru
      _
    // Predicated region
    $region6: #{tpu_custom_call.1} parent=1 // pred_check
      _
    $region7: #{tpu_custom_call.1} parent=1 // pred_check_branch
      %19 = sbr.rel (0) target = $region9
    $region8: #{tpu_custom_call.1} parent=1 // pred_region
      %20 = dma.done [#allocation3], 32
    $region9: #{tpu_custom_call.1} parent=1 // pred_fallthru
      _
    %v21 = vld [vmem:[#allocation2] sm:$0x3]
    %v22 = vmul.f32 %v21, 1000.0
    %v24 = vlaneseq
    %v25 = vshrl.u32 %v24, 7
    %v26 = vsub.s32 0, %v25
    %v27 = vrot.slane %v22, %v26
    %v28 = vlaneseq
    %v29 = vshrl.u32 %v28, 7
    %v30 = vsub.s32 1, %v29
    %v31 = vrot.slane %v22, %v30
    %v32 = vcombine.low %v27, %v31
    %v34 = vunpack.c.l.s4 1983009808
    %v35 = vunpack.c.0.s8 %v34
    %v36 = vlaneseq
    %v37 = vshrl.u32 %v36, 7
    %v38 = vsub.s32 %v35, %v37
    %v39 = vrot.slane %v32, %v38
    %41 = vst [vmem:[#allocation5] sm:$0xf] %v39
    // Predicated region
    $region10: #{tpu_custom_call.1} parent=1 // pred_check
      _
    $region11: #{tpu_custom_call.1} parent=1 // pred_check_branch
      %43 = sbr.rel (0) target = $region13
    $region12: #{tpu_custom_call.1} parent=1 // pred_region
      %s45 = ssub.s32 64, 64
      %46 = vsyncadd [#allocation4], %s45
      %s48 = sshll.u32 [#allocation5], 4
      %s49 = int_to_ptr.vmem [resolvable:$true] %s48
      %51 = dma.vmem_to_hbm [thread:$0]  %s49, 64, %s1, [#allocation4]
    $region13: #{tpu_custom_call.1} parent=1 // pred_fallthru
      _
    // Predicated region
    $region14: #{tpu_custom_call.1} parent=1 // pred_check
      _
    $region15: #{tpu_custom_call.1} parent=1 // pred_check_branch
      %53 = sbr.rel (0) target = $region17
    $region16: #{tpu_custom_call.1} parent=1 // pred_region
      %54 = dma.done [#allocation4], 64
    $region17: #{tpu_custom_call.1} parent=1 // pred_fallthru
      _
    %55 = vsyncpa [#allocation3], 1
    %56 = vsyncpa [#allocation4], 1

</llo_original>
